<compile_context>
chip_gen: v6e
topology: v6e:2x2x1
jax: 0.10.0
libtpu: 0.0.40
codegen_flags: <defaults>
</compile_context>

<pallas_src>
import math

import jax
import jax.numpy as jnp
import numpy as np
from jax import lax
from jax.experimental import pallas as pl
from jax.experimental.pallas import tpu as pltpu

# ----------------------------- configuration ---------------------------------
B = 2
H = W = 8
L = H * W                    # 64 tokens per image
C = 24                       # embed_dim
NH = 2                       # num_heads
CS = 3                       # channel_scale
C_OUT = C // CS              # 8  : attention / block output channels
HD = C // NH // CS           # 4  : per-head dim after channel_scale
HIDDEN = int(C_OUT * 4.0)    # 32 : mlp hidden dim
WINDOW_SIZE = 1
SHIFT_SIZE = 0
# Reference qk-scale quirk: head_dim = dim // num_heads = 12 even though the real per-head
# dim after channel_scale is 4. Dead math at window_size = 1; only used in the reference.
SCALE = (C // NH) ** -0.5
EPS = 1e-5                   # nn.LayerNorm default eps
TOKENS = B * L               # 128 tokens -> exactly one 128-lane tile

# The dead-path elimination (softmax over one key == 1  =>  attn @ v == v) is only valid
# for window_size = 1 / shift_size = 0. Guard it explicitly.
assert WINDOW_SIZE == 1 and SHIFT_SIZE == 0, "kernel specialization requires window_size=1"
# Single-step / single-TensorCore design: one lane tile of tokens.
# TODO(synk): if TOKENS grows beyond 128, add a token-tile grid axis marked "parallel" so
# v7x's two TensorCores each take half the lane tiles.
assert TOKENS == 128

# --------------------- packed & folded parameter slab --------------------------
# One f32 slab in PyTorch (out_features, in_features) orientation; each row block carries
# its bias as one extra lane column. All row offsets are sublane (8) aligned.
#   attn fold :  a = wp @ (wv @ h + bv) + bp  =  Wa @ h + ba,   Wa = wp@wv, ba = wp@bv + bp
#   norm1 fold:  h = n1*g1 + b1               =>  Wa' = Wa*g1,  ba' = Wa@b1 + ba
#   norm2 fold:  z = n2*g2 + b2               =>  w1' = w1*g2,  c1' = w1@b2 + c1
RA = 0                       # rows [ 0,  8): Wa' (8,24)  | col C      = ba'
R1 = C_OUT                   # rows [ 8, 40): w1' (32,8)  | col C_OUT  = c1'
R2 = C_OUT + HIDDEN          # rows [40, 48): w2  (8,32)  | col HIDDEN = c2
W_ROWS = R2 + C_OUT          # 48
W_COLS = HIDDEN + 1          # 33 (widest row block; lane-padded to 128 in VMEM anyway)


# ------------------------------- GELU ------------------------------------------
def _gelu_tanh(x):
    # tanh approximation lowers to the EUP (its own VLIW slot, overlaps VPU/MXU work).
    # TODO(synk): PyTorch nn.GELU() default is erf-based; tanh deviates by ~1e-3 max abs.
    c = math.sqrt(2.0 / math.pi)
    return 0.5 * x * (1.0 + jnp.tanh(c * (x + 0.044715 * x * x * x)))


# ------------------------------- Pallas kernel ---------------------------------
def _kernel(x_ref, w_ref, o_ref):
    # x_ref: (TOKENS, C) = (128, 24) natural token-major layout (no transpose anywhere).
    # w_ref: (W_ROWS, W_COLS) = (48, 33) folded parameter slab.
    # o_ref: (C_OUT, TOKENS) = (8, 128) lane-dense output slab.
    x = x_ref[...]

    # static, zero-cost slices of the single parameter slab
    wa = w_ref[RA:RA + C_OUT, 0:C]                      # (8, 24)  folded attn weight
    ba = w_ref[RA:RA + C_OUT, C:C + 1]                  # (8, 1)   folded attn bias
    w1 = w_ref[R1:R1 + HIDDEN, 0:C_OUT]                 # (32, 8)  folded fc1 weight
    c1 = w_ref[R1:R1 + HIDDEN, C_OUT:C_OUT + 1]         # (32, 1)  folded fc1 bias
    w2 = w_ref[R2:R2 + C_OUT, 0:HIDDEN]                 # (8, 32)  fc2 weight
    c2 = w_ref[R2:R2 + C_OUT, HIDDEN:HIDDEN + 1]        # (8, 1)   fc2 bias

    # ---- norm1: pure normalization over channels (lane axis); affine folded into wa/ba ----
    mu = jnp.mean(x, axis=1, keepdims=True)
    xc = x - mu
    var = jnp.mean(xc * xc, axis=1, keepdims=True)
    n1 = xc * lax.rsqrt(var + EPS)                      # (128, 24) f32

    # ---- W-MSA (window_size=1 => attn@v == v) + proj, folded into ONE matmul ----
    # Contract the channel axis of both operands (q@k^T-style dimension numbers), so the
    # result lands channels-on-sublanes / tokens-on-lanes without any transpose op.
    a = lax.dot_general(wa, n1, (((1,), (1,)), ((), ())),
                        preferred_element_type=jnp.float32) + ba   # (8, 128)
    # attn_drop / proj_drop have p = 0 and drop_path = Identity -> no-ops.

    # ---- norm2: pure normalization over the 8 output channels (sublane axis) ----
    mu2 = jnp.mean(a, axis=0, keepdims=True)
    ac = a - mu2
    var2 = jnp.mean(ac * ac, axis=0, keepdims=True)
    n2 = ac * lax.rsqrt(var2 + EPS)                     # (8, 128)

    # ---- residual MLP branch: out = a + fc2(gelu(fc1(n2))) ----
    t = jnp.dot(w1, n2, preferred_element_type=jnp.float32) + c1   # (32, 128)
    t = _gelu_tanh(t)
    t = jnp.dot(w2, t, preferred_element_type=jnp.float32) + c2    # (8, 128)

    o_ref[...] = a + t                                  # lane-dense (8, 128) store


# ------------------------------- host-side packing ------------------------------
def pack_params(params):
    """Fold attn.proj + both LayerNorm affines into the weights and pack one f32 slab."""
    (g1, b1, _wq, _bq, _wk, _bk, wv, bv, _rpb, wp, bp, g2, b2, w1, c1, w2, c2) = params
    # attention fold (attn@v == v at window_size = 1)
    wa = wp @ wv                                        # (8, 24)
    ba = wp @ bv + bp                                   # (8,)
    # norm1 affine fold
    wa_f = wa * g1[None, :]
    ba_f = wa @ b1 + ba
    # norm2 affine fold
    w1_f = w1 * g2[None, :]
    c1_f = w1 @ b2 + c1

    slab = jnp.zeros((W_ROWS, W_COLS), jnp.float32)
    slab = slab.at[RA:RA + C_OUT, 0:C].set(wa_f)
    slab = slab.at[RA:RA + C_OUT, C].set(ba_f)
    slab = slab.at[R1:R1 + HIDDEN, 0:C_OUT].set(w1_f)
    slab = slab.at[R1:R1 + HIDDEN, C_OUT].set(c1_f)
    slab = slab.at[R2:R2 + C_OUT, 0:HIDDEN].set(w2)
    slab = slab.at[R2:R2 + C_OUT, HIDDEN].set(c2)
    return slab


# ------------------------------- wrapper ----------------------------------------
def fusion_transformer_forward(x, w_slab):
    assert x.shape == (B, L, C)
    # window_partition / window_reverse with window_size = 1 are row-major flattens, so the
    # input needs only a free contiguous reshape (no data movement, no wrapper transpose).
    x2d = x.reshape(TOKENS, C)                          # (128, 24)
    out_t = pl.pallas_call(
        _kernel,
        out_shape=jax.ShapeDtypeStruct((C_OUT, TOKENS), jnp.float32),
        in_specs=[
            pl.BlockSpec(memory_space=pltpu.MemorySpace.VMEM),
            pl.BlockSpec(memory_space=pltpu.MemorySpace.VMEM),
        ],
        out_specs=pl.BlockSpec(memory_space=pltpu.MemorySpace.VMEM),
    )(x2d, w_slab)
    # out_t is the lane-dense (C_OUT, TOKENS) slab; a fused downstream consumer could take it
    # directly. The transpose back to module layout is one tiny (8,128) XLA op.
    return out_t.T.reshape(B, L, C_OUT)


# -------------------------- pure-JAX reference (sanity) --------------------------
def _layernorm(x, g, b):
    mu = x.mean(-1, keepdims=True)
    xc = x - mu
    var = (xc * xc).mean(-1, keepdims=True)
    return xc * lax.rsqrt(var + EPS) * g + b


def reference_forward(x, params):
    """Full module math (including the dead q/k/rpb/softmax path) in f32."""
    (g1, b1, wq, bq, wk, bk, wv, bv, rpb, wp, bp, g2, b2, w1, c1, w2, c2) = params
    xn = _layernorm(x, g1, b1)
    xw = xn.reshape(B * L, 1, C)                        # windows of N = 1 token
    q = (xw @ wq.T + bq).reshape(-1, 1, NH, HD).transpose(0, 2, 1, 3)
    k = (xw @ wk.T + bk).reshape(-1, 1, NH, HD).transpose(0, 2, 1, 3)
    v = (xw @ wv.T + bv).reshape(-1, 1, NH, HD).transpose(0, 2, 1, 3)
    attn = (q * SCALE) @ jnp.swapaxes(k, -2, -1) + rpb.reshape(1, NH, 1, 1)
    attn = jax.nn.softmax(attn, axis=-1)                # length-1 axis -> exactly 1
    o = (attn @ v).transpose(0, 2, 1, 3).reshape(-1, 1, C_OUT)
    o = (o @ wp.T + bp).reshape(B, L, C_OUT)
    z = _layernorm(o, g2, b2)
    t = _gelu_tanh(z @ w1.T + c1) @ w2.T + c2
    return o + t


# ----------------------------------- main ----------------------------------------
if __name__ == "__main__":
    key = jax.random.PRNGKey(0)
    ks = jax.random.split(key, 20)

    def nrm(k, shape, s=0.1):
        return s * jax.random.normal(k, shape, dtype=jnp.float32)

    # All linear weights in PyTorch (out_features, in_features) layout.
    params = (
        1.0 + nrm(ks[0], (C,)),            # norm1 weight
        nrm(ks[1], (C,), 0.05),            # norm1 bias
        nrm(ks[2], (C_OUT, C)),            # attn.q weight         (dead at window_size=1)
        nrm(ks[3], (C_OUT,), 0.05),        # attn.q bias           (dead)
        nrm(ks[4], (C_OUT, C)),            # attn.kv k-half weight (dead)
        nrm(ks[5], (C_OUT,), 0.05),        # attn.kv k-half bias   (dead)
        nrm(ks[6], (C_OUT, C)),            # attn.kv v-half weight
        nrm(ks[7], (C_OUT,), 0.05),        # attn.kv v-half bias
        nrm(ks[8], (NH,), 0.02),           # relative position bias per head (dead)
        nrm(ks[9], (C_OUT, C_OUT)),        # attn.proj weight
        nrm(ks[10], (C_OUT,), 0.05),       # attn.proj bias
        1.0 + nrm(ks[11], (C_OUT,)),       # norm2 weight
        nrm(ks[12], (C_OUT,), 0.05),       # norm2 bias
        nrm(ks[13], (HIDDEN, C_OUT)),      # mlp.fc1 weight
        nrm(ks[14], (HIDDEN,), 0.05),      # mlp.fc1 bias
        nrm(ks[15], (C_OUT, HIDDEN)),      # mlp.fc2 weight
        nrm(ks[16], (C_OUT,), 0.05),       # mlp.fc2 bias
    )
    x = jax.random.normal(ks[17], (B, L, C), dtype=jnp.float32)

    w_slab = pack_params(params)
    out = jax.block_until_ready(fusion_transformer_forward(x, w_slab))

    ref = reference_forward(x, params)
    assert out.shape == (B, L, C_OUT)
    # All math is f32 now (no explicit bf16 casts); remaining deviation is MXU default
    # dot precision + host-side fold-order rounding, observed O(1e-3).
    assert np.allclose(np.asarray(out), np.asarray(ref), rtol=1e-2, atol=1e-2)
    print("KERNEL_OK")
</pallas_src>

<mosaic_0001>
module attributes {stable_mosaic.version = 11 : i64} {
  func.func @_kernel(%arg0: memref<128x24xf32, #tpu.memory_space<vmem>>, %arg1: memref<48x33xf32, #tpu.memory_space<vmem>>, %arg2: memref<8x128xf32, #tpu.memory_space<vmem>>) attributes {dimension_semantics = [], scalar_prefetch = 0 : i64, scratch_operands = 0 : i64, tpu.core_type = #tpu.core_type<tc>} {
    %c0 = arith.constant 0 : index
    %c0_0 = arith.constant 0 : index
    %0 = vector.load %arg0[%c0, %c0_0] : memref<128x24xf32, #tpu.memory_space<vmem>>, vector<128x24xf32>
    %c0_1 = arith.constant 0 : index
    %c0_2 = arith.constant 0 : index
    %1 = vector.load %arg1[%c0_1, %c0_2] : memref<48x33xf32, #tpu.memory_space<vmem>>, vector<8x24xf32>
    %c0_3 = arith.constant 0 : index
    %c24 = arith.constant 24 : index
    %2 = vector.load %arg1[%c0_3, %c24] : memref<48x33xf32, #tpu.memory_space<vmem>>, vector<8x1xf32>
    %c8 = arith.constant 8 : index
    %c0_4 = arith.constant 0 : index
    %3 = vector.load %arg1[%c8, %c0_4] : memref<48x33xf32, #tpu.memory_space<vmem>>, vector<32x8xf32>
    %c8_5 = arith.constant 8 : index
    %c8_6 = arith.constant 8 : index
    %4 = vector.load %arg1[%c8_5, %c8_6] : memref<48x33xf32, #tpu.memory_space<vmem>>, vector<32x1xf32>
    %c40 = arith.constant 40 : index
    %c0_7 = arith.constant 0 : index
    %5 = vector.load %arg1[%c40, %c0_7] : memref<48x33xf32, #tpu.memory_space<vmem>>, vector<8x32xf32>
    %c40_8 = arith.constant 40 : index
    %c32 = arith.constant 32 : index
    %6 = vector.load %arg1[%c40_8, %c32] : memref<48x33xf32, #tpu.memory_space<vmem>>, vector<8x1xf32>
    %cst = arith.constant dense<0.000000e+00> : vector<128xf32>
    %7 = vector.multi_reduction <add>, %0, %cst [1] : vector<128x24xf32> to vector<128xf32>
    %8 = vector.shape_cast %7 : vector<128xf32> to vector<128x1xf32>
    %cst_9 = arith.constant 2.400000e+01 : f32
    %9 = vector.broadcast %cst_9 : f32 to vector<128x1xf32>
    %10 = arith.divf %8, %9 : vector<128x1xf32>
    %11 = vector.broadcast %10 : vector<128x1xf32> to vector<128x24xf32>
    %12 = arith.subf %0, %11 : vector<128x24xf32>
    %13 = arith.mulf %12, %12 : vector<128x24xf32>
    %cst_10 = arith.constant dense<0.000000e+00> : vector<128xf32>
    %14 = vector.multi_reduction <add>, %13, %cst_10 [1] : vector<128x24xf32> to vector<128xf32>
    %15 = vector.shape_cast %14 : vector<128xf32> to vector<128x1xf32>
    %cst_11 = arith.constant 2.400000e+01 : f32
    %16 = vector.broadcast %cst_11 : f32 to vector<128x1xf32>
    %17 = arith.divf %15, %16 : vector<128x1xf32>
    %cst_12 = arith.constant 9.99999974E-6 : f32
    %18 = vector.broadcast %cst_12 : f32 to vector<128x1xf32>
    %19 = arith.addf %17, %18 : vector<128x1xf32>
    %20 = math.rsqrt %19 : vector<128x1xf32>
    %21 = vector.broadcast %20 : vector<128x1xf32> to vector<128x24xf32>
    %22 = arith.mulf %12, %21 : vector<128x24xf32>
    %cst_13 = arith.constant dense<0.000000e+00> : vector<8x128xf32>
    %23 = tpu.matmul %1, %22, %cst_13 {dimension_numbers = #tpu.dot_dimension_numbers<[1], [1], [0], [0], [0, 0, 1, 0], [], []>} : vector<8x24xf32>, vector<128x24xf32>, vector<8x128xf32> -> vector<8x128xf32>
    %24 = vector.broadcast %2 : vector<8x1xf32> to vector<8x128xf32>
    %25 = arith.addf %23, %24 : vector<8x128xf32>
    %cst_14 = arith.constant dense<0.000000e+00> : vector<128xf32>
    %26 = vector.multi_reduction <add>, %25, %cst_14 [0] : vector<8x128xf32> to vector<128xf32>
    %27 = vector.shape_cast %26 : vector<128xf32> to vector<1x128xf32>
    %cst_15 = arith.constant 8.000000e+00 : f32
    %28 = vector.broadcast %cst_15 : f32 to vector<1x128xf32>
    %29 = arith.divf %27, %28 : vector<1x128xf32>
    %30 = vector.broadcast %29 : vector<1x128xf32> to vector<8x128xf32>
    %31 = arith.subf %25, %30 : vector<8x128xf32>
    %32 = arith.mulf %31, %31 : vector<8x128xf32>
    %cst_16 = arith.constant dense<0.000000e+00> : vector<128xf32>
    %33 = vector.multi_reduction <add>, %32, %cst_16 [0] : vector<8x128xf32> to vector<128xf32>
    %34 = vector.shape_cast %33 : vector<128xf32> to vector<1x128xf32>
    %cst_17 = arith.constant 8.000000e+00 : f32
    %35 = vector.broadcast %cst_17 : f32 to vector<1x128xf32>
    %36 = arith.divf %34, %35 : vector<1x128xf32>
    %cst_18 = arith.constant 9.99999974E-6 : f32
    %37 = vector.broadcast %cst_18 : f32 to vector<1x128xf32>
    %38 = arith.addf %36, %37 : vector<1x128xf32>
    %39 = math.rsqrt %38 : vector<1x128xf32>
    %40 = vector.broadcast %39 : vector<1x128xf32> to vector<8x128xf32>
    %41 = arith.mulf %31, %40 : vector<8x128xf32>
    %cst_19 = arith.constant dense<0.000000e+00> : vector<32x128xf32>
    %42 = tpu.matmul %3, %41, %cst_19 {dimension_numbers = #tpu.dot_dimension_numbers<[1], [0], [0], [1], [0, 0, 1, 1], [], []>} : vector<32x8xf32>, vector<8x128xf32>, vector<32x128xf32> -> vector<32x128xf32>
    %43 = vector.broadcast %4 : vector<32x1xf32> to vector<32x128xf32>
    %44 = arith.addf %42, %43 : vector<32x128xf32>
    %cst_20 = arith.constant 5.000000e-01 : f32
    %45 = vector.broadcast %cst_20 : f32 to vector<32x128xf32>
    %46 = arith.mulf %45, %44 : vector<32x128xf32>
    %cst_21 = arith.constant 4.471500e-02 : f32
    %47 = vector.broadcast %cst_21 : f32 to vector<32x128xf32>
    %48 = arith.mulf %47, %44 : vector<32x128xf32>
    %49 = arith.mulf %48, %44 : vector<32x128xf32>
    %50 = arith.mulf %49, %44 : vector<32x128xf32>
    %51 = arith.addf %44, %50 : vector<32x128xf32>
    %cst_22 = arith.constant 0.797884583 : f32
    %52 = vector.broadcast %cst_22 : f32 to vector<32x128xf32>
    %53 = arith.mulf %52, %51 : vector<32x128xf32>
    %54 = math.tanh %53 : vector<32x128xf32>
    %cst_23 = arith.constant 1.000000e+00 : f32
    %55 = vector.broadcast %cst_23 : f32 to vector<32x128xf32>
    %56 = arith.addf %55, %54 : vector<32x128xf32>
    %57 = arith.mulf %46, %56 : vector<32x128xf32>
    %cst_24 = arith.constant dense<0.000000e+00> : vector<8x128xf32>
    %58 = tpu.matmul %5, %57, %cst_24 {dimension_numbers = #tpu.dot_dimension_numbers<[1], [0], [0], [1], [0, 0, 1, 1], [], []>} : vector<8x32xf32>, vector<32x128xf32>, vector<8x128xf32> -> vector<8x128xf32>
    %59 = vector.broadcast %6 : vector<8x1xf32> to vector<8x128xf32>
    %60 = arith.addf %58, %59 : vector<8x128xf32>
    %61 = arith.addf %25, %60 : vector<8x128xf32>
    %c0_25 = arith.constant 0 : index
    %c0_26 = arith.constant 0 : index
    %62 = vector.load %arg2[%c0_25, %c0_26] : memref<8x128xf32, #tpu.memory_space<vmem>>, vector<8x128xf32>
    tpu.vector_store %arg2[%c0_25, %c0_26], %61 {strides = array<i32>} : memref<8x128xf32, #tpu.memory_space<vmem>>, vector<8x128xf32>,
    return
  }
}

</mosaic_0001>

<llo_original>
// kernel: tpu_custom_call.1
$region0: #{tpu_custom_call.1}
  #allocation0 [shape = 'u32[]', space=smem, size = 0x4, offset = 0x4, fixed_abs, tag = 'smem constant byte address 0x4 - core index']
  #allocation1 [shape = 'u32[144,128]{1,0:T(1,128)}', space=vmem, size = 0x12000, scoped, tag = 'internal scratch']
  %s0 = inlined_call_operand.vmem [shape: f32[128,24], index: 0, kind: input, shape index: {}]
  %s1 = inlined_call_operand.vmem [shape: f32[48,33], index: 1, kind: input, shape index: {}]
  %s2 = inlined_call_operand.hbm [shape: f32[8,128], index: 2, kind: output, shape index: {}]
  %s3 = sld [smem:[#allocation0]]
  $region18: #{tpu_custom_call.1} parent=0
    _
  %s5 = ssub.s32 1, %s3
  %s6 = scalar_select 0, %s5, %s3
  $region1: #{tpu_custom_call.1} parent=0
    #allocation2 [shape = 'u8[4096]{0}', space=vmem, size = 0x1000, scoped, tag = 'output window, operand 0, single buffered']
    #allocation3 [shape = 's32[1]{0}', space=sflag, size = 0x4, scoped, tag = 'scoped memory for tpu_custom_call.1']
    %7 = vsyncpa [#allocation3], 0
    // Predicated region
    $region2: #{tpu_custom_call.1} parent=1 // pred_check
      _
    $region3: #{tpu_custom_call.1} parent=1 // pred_check_branch
      %9 = sbr.rel (0) target = $region5
    $region4: #{tpu_custom_call.1} parent=1 // pred_region
      _
    $region5: #{tpu_custom_call.1} parent=1 // pred_fallthru
      _
    // Predicated region
    $region6: #{tpu_custom_call.1} parent=1 // pred_check
      _
    $region7: #{tpu_custom_call.1} parent=1 // pred_check_branch
      %11 = sbr.rel (0) target = $region9
    $region8: #{tpu_custom_call.1} parent=1 // pred_region
      _
    $region9: #{tpu_custom_call.1} parent=1 // pred_fallthru
      _
    %v12 = vld [vmem:[%s0] sm:$0xff]
    %v13 = vld [vmem:[%s0 + $0x8] sm:$0xff]
    %v14 = vld [vmem:[%s0 + $0x10] sm:$0xff]
    %v15 = vld [vmem:[%s0 + $0x18] sm:$0xff]
    %v16 = vld [vmem:[%s0 + $0x20] sm:$0xff]
    %v17 = vld [vmem:[%s0 + $0x28] sm:$0xff]
    %v18 = vld [vmem:[%s0 + $0x30] sm:$0xff]
    %v19 = vld [vmem:[%s0 + $0x38] sm:$0xff]
    %v20 = vld [vmem:[%s0 + $0x40] sm:$0xff]
    %v21 = vld [vmem:[%s0 + $0x48] sm:$0xff]
    %v22 = vld [vmem:[%s0 + $0x50] sm:$0xff]
    %v23 = vld [vmem:[%s0 + $0x58] sm:$0xff]
    %v24 = vld [vmem:[%s0 + $0x60] sm:$0xff]
    %v25 = vld [vmem:[%s0 + $0x68] sm:$0xff]
    %v26 = vld [vmem:[%s0 + $0x70] sm:$0xff]
    %v27 = vld [vmem:[%s0 + $0x78] sm:$0xff]
    %v28 = vld [vmem:[%s1] sm:$0xff]
    %v29 = vld [vmem:[%s1 + $0x8] sm:$0xff]
    %v30 = vld [vmem:[%s1 + $0x10] sm:$0xff]
    %v31 = vld [vmem:[%s1 + $0x18] sm:$0xff]
    %v32 = vld [vmem:[%s1 + $0x20] sm:$0xff]
    %v33 = vld [vmem:[%s1 + $0x28] sm:$0xff]
    %vm34 = vcmask 195584
    %v35 = vsel %vm34, %v12, 0.0
    %36 = vadd.xlane.f32.xlu0 %v35
    %v37 = vpop.xlane.xlu0 %36
    %v38 = vsel %vm34, %v13, 0.0
    %39 = vadd.xlane.f32.xlu0 %v38
    %v40 = vpop.xlane.xlu0 %39
    %v41 = vsel %vm34, %v14, 0.0
    %42 = vadd.xlane.f32.xlu0 %v41
    %v43 = vpop.xlane.xlu0 %42
    %v44 = vsel %vm34, %v15, 0.0
    %45 = vadd.xlane.f32.xlu0 %v44
    %v46 = vpop.xlane.xlu0 %45
    %v47 = vsel %vm34, %v16, 0.0
    %48 = vadd.xlane.f32.xlu0 %v47
    %v49 = vpop.xlane.xlu0 %48
    %v50 = vsel %vm34, %v17, 0.0
    %51 = vadd.xlane.f32.xlu0 %v50
    %v52 = vpop.xlane.xlu0 %51
    %v53 = vsel %vm34, %v18, 0.0
    %54 = vadd.xlane.f32.xlu0 %v53
    %v55 = vpop.xlane.xlu0 %54
    %v56 = vsel %vm34, %v19, 0.0
    %57 = vadd.xlane.f32.xlu0 %v56
    %v58 = vpop.xlane.xlu0 %57
    %v59 = vsel %vm34, %v20, 0.0
    %60 = vadd.xlane.f32.xlu0 %v59
    %v61 = vpop.xlane.xlu0 %60
    %v62 = vsel %vm34, %v21, 0.0
    %63 = vadd.xlane.f32.xlu0 %v62
    %v64 = vpop.xlane.xlu0 %63
    %v65 = vsel %vm34, %v22, 0.0
    %66 = vadd.xlane.f32.xlu0 %v65
    %v67 = vpop.xlane.xlu0 %66
    %v68 = vsel %vm34, %v23, 0.0
    %69 = vadd.xlane.f32.xlu0 %v68
    %v70 = vpop.xlane.xlu0 %69
    %v71 = vsel %vm34, %v24, 0.0
    %72 = vadd.xlane.f32.xlu0 %v71
    %v73 = vpop.xlane.xlu0 %72
    %v74 = vsel %vm34, %v25, 0.0
    %75 = vadd.xlane.f32.xlu0 %v74
    %v76 = vpop.xlane.xlu0 %75
    %v77 = vsel %vm34, %v26, 0.0
    %78 = vadd.xlane.f32.xlu0 %v77
    %v79 = vpop.xlane.xlu0 %78
    %v80 = vsel %vm34, %v27, 0.0
    %81 = vadd.xlane.f32.xlu0 %v80
    %v82 = vpop.xlane.xlu0 %81
    %v83 = vrcp.pop 24.0
    %v84 = vmul.f32 %v37, %v83
    %v85 = vmul.f32 %v40, %v83
    %v86 = vmul.f32 %v43, %v83
    %v87 = vmul.f32 %v46, %v83
    %v88 = vmul.f32 %v49, %v83
    %v89 = vmul.f32 %v52, %v83
    %v90 = vmul.f32 %v55, %v83
    %v91 = vmul.f32 %v58, %v83
    %v92 = vmul.f32 %v61, %v83
    %v93 = vmul.f32 %v64, %v83
    %v94 = vmul.f32 %v67, %v83
    %v95 = vmul.f32 %v70, %v83
    %v96 = vmul.f32 %v73, %v83
    %v97 = vmul.f32 %v76, %v83
    %v98 = vmul.f32 %v79, %v83
    %v99 = vmul.f32 %v82, %v83
    %v100 = vsub.f32 %v12, %v84
    %v101 = vsub.f32 %v13, %v85
    %v102 = vsub.f32 %v14, %v86
    %v103 = vsub.f32 %v15, %v87
    %v104 = vsub.f32 %v16, %v88
    %v105 = vsub.f32 %v17, %v89
    %v106 = vsub.f32 %v18, %v90
    %v107 = vsub.f32 %v19, %v91
    %v108 = vsub.f32 %v20, %v92
    %v109 = vsub.f32 %v21, %v93
    %v110 = vsub.f32 %v22, %v94
    %v111 = vsub.f32 %v23, %v95
    %v112 = vsub.f32 %v24, %v96
    %v113 = vsub.f32 %v25, %v97
    %v114 = vsub.f32 %v26, %v98
    %v115 = vsub.f32 %v27, %v99
    %v116 = vmul.f32 %v100, %v100
    %v117 = vmul.f32 %v101, %v101
    %v118 = vmul.f32 %v102, %v102
    %v119 = vmul.f32 %v103, %v103
    %v120 = vmul.f32 %v104, %v104
    %v121 = vmul.f32 %v105, %v105
    %v122 = vmul.f32 %v106, %v106
    %v123 = vmul.f32 %v107, %v107
    %v124 = vmul.f32 %v108, %v108
    %v125 = vmul.f32 %v109, %v109
    %v126 = vmul.f32 %v110, %v110
    %v127 = vmul.f32 %v111, %v111
    %v128 = vmul.f32 %v112, %v112
    %v129 = vmul.f32 %v113, %v113
    %v130 = vmul.f32 %v114, %v114
    %v131 = vmul.f32 %v115, %v115
    %v132 = vsel %vm34, %v116, 0.0
    %133 = vadd.xlane.f32.xlu0 %v132
    %v134 = vpop.xlane.xlu0 %133
    %v135 = vsel %vm34, %v117, 0.0
    %136 = vadd.xlane.f32.xlu0 %v135
    %v137 = vpop.xlane.xlu0 %136
    %v138 = vsel %vm34, %v118, 0.0
    %139 = vadd.xlane.f32.xlu0 %v138
    %v140 = vpop.xlane.xlu0 %139
    %v141 = vsel %vm34, %v119, 0.0
    %142 = vadd.xlane.f32.xlu0 %v141
    %v143 = vpop.xlane.xlu0 %142
    %v144 = vsel %vm34, %v120, 0.0
    %145 = vadd.xlane.f32.xlu0 %v144
    %v146 = vpop.xlane.xlu0 %145
    %v147 = vsel %vm34, %v121, 0.0
    %148 = vadd.xlane.f32.xlu0 %v147
    %v149 = vpop.xlane.xlu0 %148
    %v150 = vsel %vm34, %v122, 0.0
    %151 = vadd.xlane.f32.xlu0 %v150
    %v152 = vpop.xlane.xlu0 %151
    %v153 = vsel %vm34, %v123, 0.0
    %154 = vadd.xlane.f32.xlu0 %v153
    %v155 = vpop.xlane.xlu0 %154
    %v156 = vsel %vm34, %v124, 0.0
    %157 = vadd.xlane.f32.xlu0 %v156
    %v158 = vpop.xlane.xlu0 %157
    %v159 = vsel %vm34, %v125, 0.0
    %160 = vadd.xlane.f32.xlu0 %v159
    %v161 = vpop.xlane.xlu0 %160
    %v162 = vsel %vm34, %v126, 0.0
    %163 = vadd.xlane.f32.xlu0 %v162
    %v164 = vpop.xlane.xlu0 %163
    %v165 = vsel %vm34, %v127, 0.0
    %166 = vadd.xlane.f32.xlu0 %v165
    %v167 = vpop.xlane.xlu0 %166
    %v168 = vsel %vm34, %v128, 0.0
    %169 = vadd.xlane.f32.xlu0 %v168
    %v170 = vpop.xlane.xlu0 %169
    %v171 = vsel %vm34, %v129, 0.0
    %172 = vadd.xlane.f32.xlu0 %v171
    %v173 = vpop.xlane.xlu0 %172
    %v174 = vsel %vm34, %v130, 0.0
    %175 = vadd.xlane.f32.xlu0 %v174
    %v176 = vpop.xlane.xlu0 %175
    %v177 = vsel %vm34, %v131, 0.0
    %178 = vadd.xlane.f32.xlu0 %v177
    %v179 = vpop.xlane.xlu0 %178
    %v180 = vmul.f32 %v134, %v83
    %v181 = vmul.f32 %v137, %v83
    %v182 = vmul.f32 %v140, %v83
    %v183 = vmul.f32 %v143, %v83
    %v184 = vmul.f32 %v146, %v83
    %v185 = vmul.f32 %v149, %v83
    %v186 = vmul.f32 %v152, %v83
    %v187 = vmul.f32 %v155, %v83
    %v188 = vmul.f32 %v158, %v83
    %v189 = vmul.f32 %v161, %v83
    %v190 = vmul.f32 %v164, %v83
    %v191 = vmul.f32 %v167, %v83
    %v192 = vmul.f32 %v170, %v83
    %v193 = vmul.f32 %v173, %v83
    %v194 = vmul.f32 %v176, %v83
    %v195 = vmul.f32 %v179, %v83
    %v196 = vadd.f32 %v180, 1e-05
    %v197 = vadd.f32 %v181, 1e-05
    %v198 = vadd.f32 %v182, 1e-05
    %v199 = vadd.f32 %v183, 1e-05
    %v200 = vadd.f32 %v184, 1e-05
    %v201 = vadd.f32 %v185, 1e-05
    %v202 = vadd.f32 %v186, 1e-05
    %v203 = vadd.f32 %v187, 1e-05
    %v204 = vadd.f32 %v188, 1e-05
    %v205 = vadd.f32 %v189, 1e-05
    %v206 = vadd.f32 %v190, 1e-05
    %v207 = vadd.f32 %v191, 1e-05
    %v208 = vadd.f32 %v192, 1e-05
    %v209 = vadd.f32 %v193, 1e-05
    %v210 = vadd.f32 %v194, 1e-05
    %v211 = vadd.f32 %v195, 1e-05
    %v212 = vrsqrt.pop %v196
    %v213 = vrsqrt.pop %v197
    %v214 = vrsqrt.pop %v198
    %v215 = vrsqrt.pop %v199
    %v216 = vrsqrt.pop %v200
    %v217 = vrsqrt.pop %v201
    %v218 = vrsqrt.pop %v202
    %v219 = vrsqrt.pop %v203
    %v220 = vrsqrt.pop %v204
    %v221 = vrsqrt.pop %v205
    %v222 = vrsqrt.pop %v206
    %v223 = vrsqrt.pop %v207
    %v224 = vrsqrt.pop %v208
    %v225 = vrsqrt.pop %v209
    %v226 = vrsqrt.pop %v210
    %v227 = vrsqrt.pop %v211
    %v228 = vmul.f32 %v100, %v212
    %v229 = vmul.f32 %v101, %v213
    %v230 = vmul.f32 %v102, %v214
    %v231 = vmul.f32 %v103, %v215
    %v232 = vmul.f32 %v104, %v216
    %v233 = vmul.f32 %v105, %v217
    %v234 = vmul.f32 %v106, %v218
    %v235 = vmul.f32 %v107, %v219
    %v236 = vmul.f32 %v108, %v220
    %v237 = vmul.f32 %v109, %v221
    %v238 = vmul.f32 %v110, %v222
    %v239 = vmul.f32 %v111, %v223
    %v240 = vmul.f32 %v112, %v224
    %v241 = vmul.f32 %v113, %v225
    %v242 = vmul.f32 %v114, %v226
    %v243 = vmul.f32 %v115, %v227
    %245 = vset.pattern.permute.xlu0 24
    %246 = vperm.xlu0 %245, %v28
    %v247 = vpop.permute.xlu0 %246
    %v249 = vsel %vm34, %v28, 0
    %v252 = vsel %vm34, %v228, 0
    %v255 = vsel %vm34, %v229, 0
    %v258 = vsel %vm34, %v230, 0
    %v261 = vsel %vm34, %v231, 0
    %v264 = vsel %vm34, %v232, 0
    %v267 = vsel %vm34, %v233, 0
    %v270 = vsel %vm34, %v234, 0
    %v273 = vsel %vm34, %v235, 0
    %v276 = vsel %vm34, %v236, 0
    %v279 = vsel %vm34, %v237, 0
    %v282 = vsel %vm34, %v238, 0
    %v285 = vsel %vm34, %v239, 0
    %v288 = vsel %vm34, %v240, 0
    %v291 = vsel %vm34, %v241, 0
    %v294 = vsel %vm34, %v242, 0
    %v297 = vsel %vm34, %v243, 0
    %299 = vmatprep.subr.mxu0 0.0
    %300 = vmatpush1.xpose.msra.mxu0 %v297
    %301 = vmatprep.subr.mxu0 0.0
    %302 = vmatpush1.xpose.msra.mxu0 %v294
    %303 = vmatprep.subr.mxu0 0.0
    %304 = vmatpush1.xpose.msra.mxu0 %v291
    %305 = vmatprep.subr.mxu0 0.0
    %306 = vmatpush1.xpose.msra.mxu0 %v288
    %307 = vmatprep.subr.mxu0 0.0
    %308 = vmatpush1.xpose.msra.mxu0 %v285
    %309 = vmatprep.subr.mxu0 0.0
    %310 = vmatpush1.xpose.msra.mxu0 %v282
    %311 = vmatprep.subr.mxu0 0.0
    %312 = vmatpush1.xpose.msra.mxu0 %v279
    %313 = vmatprep.subr.mxu0 0.0
    %314 = vmatpush1.xpose.msra.mxu0 %v276
    %315 = vmatprep.subr.mxu0 0.0
    %316 = vmatpush1.xpose.msra.mxu0 %v273
    %317 = vmatprep.subr.mxu0 0.0
    %318 = vmatpush1.xpose.msra.mxu0 %v270
    %319 = vmatprep.subr.mxu0 0.0
    %320 = vmatpush1.xpose.msra.mxu0 %v267
    %321 = vmatprep.subr.mxu0 0.0
    %322 = vmatpush1.xpose.msra.mxu0 %v264
    %323 = vmatprep.subr.mxu0 0.0
    %324 = vmatpush1.xpose.msra.mxu0 %v261
    %325 = vmatprep.subr.mxu0 0.0
    %326 = vmatpush1.xpose.msra.mxu0 %v258
    %327 = vmatprep.subr.mxu0 0.0
    %328 = vmatpush1.xpose.msra.mxu0 %v255
    %329 = vmatprep.subr.mxu0 0.0
    %330 = vmatpush1.xpose.msra.mxu0 %v252
    %331 = vmatprep.subr.mxu0 0.0
    %332 = vmatpush2.xpose.msra.mxu0 0.0
    %333 = vmatprep.subr.mxu0 0.0
    %334 = vmatpush2.xpose.msra.mxu0 0.0
    %335 = vmatprep.subr.mxu0 0.0
    %336 = vmatpush2.xpose.msra.mxu0 0.0
    %337 = vmatprep.subr.mxu0 0.0
    %338 = vmatpush2.xpose.msra.mxu0 0.0
    %339 = vmatprep.subr.mxu0 0.0
    %340 = vmatpush2.xpose.msra.mxu0 0.0
    %341 = vmatprep.subr.mxu0 0.0
    %342 = vmatpush2.xpose.msra.mxu0 0.0
    %343 = vmatprep.subr.mxu0 0.0
    %344 = vmatpush2.xpose.msra.mxu0 0.0
    %345 = vmatprep.subr.mxu0 0.0
    %346 = vmatpush2.xpose.msra.mxu0 0.0
    %347 = vmatprep.subr.mxu0 0.0
    %348 = vmatpush2.xpose.msra.mxu0 0.0
    %349 = vmatprep.subr.mxu0 0.0
    %350 = vmatpush2.xpose.msra.mxu0 0.0
    %351 = vmatprep.subr.mxu0 0.0
    %352 = vmatpush2.xpose.msra.mxu0 0.0
    %353 = vmatprep.subr.mxu0 0.0
    %354 = vmatpush2.xpose.msra.mxu0 0.0
    %355 = vmatprep.subr.mxu0 0.0
    %356 = vmatpush2.xpose.msra.mxu0 0.0
    %357 = vmatprep.subr.mxu0 0.0
    %358 = vmatpush2.xpose.msra.mxu0 0.0
    %359 = vmatprep.subr.mxu0 0.0
    %360 = vmatpush2.xpose.msra.mxu0 0.0
    %361 = vmatprep.subr.mxu0 0.0
    %362 = vmatpush2.xpose.msra.mxu0 0.0
    %363 = vmatprep.mubr.f32.mxu0 0.0
    %364 = vmatmul.mubr.f32.gmra.mxu0 %v249
    %v365 = vpop.f32.mrf.mxu0
    %v366 = vadd.f32 %v247, %v365
    %v367 = vpop.f32.mrf.mxu0
    %368 = vdwg.mxu0
    %v369 = vrot.slane %v366, 4
    %v370 = vadd.f32 %v366, %v369
    %v371 = vrot.slane %v370, 2
    %v372 = vadd.f32 %v370, %v371
    %v373 = vrot.slane %v372, 1
    %v374 = vadd.f32 %v372, %v373
    %v375 = vrcp.pop 8.0
    %v376 = vmul.f32 %v374, %v375
    %v377 = vsub.f32 %v366, %v376
    %v378 = vmul.f32 %v377, %v377
    %v379 = vrot.slane %v378, 4
    %v380 = vadd.f32 %v378, %v379
    %v381 = vrot.slane %v380, 2
    %v382 = vadd.f32 %v380, %v381
    %v383 = vrot.slane %v382, 1
    %v384 = vadd.f32 %v382, %v383
    %v385 = vmul.f32 %v384, %v375
    %v386 = vadd.f32 %v385, 1e-05
    %v387 = vrsqrt.pop %v386
    %v388 = vmul.f32 %v377, %v387
    %390 = vset.pattern.permute.xlu0 8
    %391 = vperm.xlu0 %390, %v29
    %v392 = vpop.permute.xlu0 %391
    %395 = vset.pattern.permute.xlu0 8
    %396 = vperm.xlu0 %395, %v30
    %v397 = vpop.permute.xlu0 %396
    %400 = vset.pattern.permute.xlu0 8
    %401 = vperm.xlu0 %400, %v31
    %v402 = vpop.permute.xlu0 %401
    %405 = vset.pattern.permute.xlu0 8
    %406 = vperm.xlu0 %405, %v32
    %v407 = vpop.permute.xlu0 %406
    %vm409 = vcmask 64512
    %v410 = vsel %vm409, %v29, 0
    %v412 = vsel %vm409, %v30, 0
    %v414 = vsel %vm409, %v31, 0
    %v416 = vsel %vm409, %v32, 0
    %418 = vmatprep.subr.mxu0 0.0
    %419 = vmatpush1.msra.mxu0 0.0
    %420 = vmatprep.subr.mxu0 0.0
    %421 = vmatpush1.msra.mxu0 0.0
    %422 = vmatprep.subr.mxu0 0.0
    %423 = vmatpush1.msra.mxu0 0.0
    %424 = vmatprep.subr.mxu0 0.0
    %425 = vmatpush1.msra.mxu0 0.0
    %426 = vmatprep.subr.mxu0 0.0
    %427 = vmatpush1.msra.mxu0 0.0
    %428 = vmatprep.subr.mxu0 0.0
    %429 = vmatpush1.msra.mxu0 0.0
    %430 = vmatprep.subr.mxu0 0.0
    %431 = vmatpush1.msra.mxu0 0.0
    %432 = vmatprep.subr.mxu0 0.0
    %433 = vmatpush1.msra.mxu0 0.0
    %434 = vmatprep.subr.mxu0 0.0
    %435 = vmatpush1.msra.mxu0 0.0
    %436 = vmatprep.subr.mxu0 0.0
    %437 = vmatpush1.msra.mxu0 0.0
    %438 = vmatprep.subr.mxu0 0.0
    %439 = vmatpush1.msra.mxu0 0.0
    %440 = vmatprep.subr.mxu0 0.0
    %441 = vmatpush1.msra.mxu0 0.0
    %442 = vmatprep.subr.mxu0 0.0
    %443 = vmatpush1.msra.mxu0 0.0
    %444 = vmatprep.subr.mxu0 0.0
    %445 = vmatpush1.msra.mxu0 0.0
    %446 = vmatprep.subr.mxu0 0.0
    %447 = vmatpush1.msra.mxu0 0.0
    %448 = vmatprep.subr.mxu0 0.0
    %449 = vmatpush1.msra.mxu0 %v388
    %450 = vmatprep.subr.mxu0 0.0
    %451 = vmatpush2.msra.mxu0 0.0
    %452 = vmatprep.subr.mxu0 0.0
    %453 = vmatpush2.msra.mxu0 0.0
    %454 = vmatprep.subr.mxu0 0.0
    %455 = vmatpush2.msra.mxu0 0.0
    %456 = vmatprep.subr.mxu0 0.0
    %457 = vmatpush2.msra.mxu0 0.0
    %458 = vmatprep.subr.mxu0 0.0
    %459 = vmatpush2.msra.mxu0 0.0
    %460 = vmatprep.subr.mxu0 0.0
    %461 = vmatpush2.msra.mxu0 0.0
    %462 = vmatprep.subr.mxu0 0.0
    %463 = vmatpush2.msra.mxu0 0.0
    %464 = vmatprep.subr.mxu0 0.0
    %465 = vmatpush2.msra.mxu0 0.0
    %466 = vmatprep.subr.mxu0 0.0
    %467 = vmatpush2.msra.mxu0 0.0
    %468 = vmatprep.subr.mxu0 0.0
    %469 = vmatpush2.msra.mxu0 0.0
    %470 = vmatprep.subr.mxu0 0.0
    %471 = vmatpush2.msra.mxu0 0.0
    %472 = vmatprep.subr.mxu0 0.0
    %473 = vmatpush2.msra.mxu0 0.0
    %474 = vmatprep.subr.mxu0 0.0
    %475 = vmatpush2.msra.mxu0 0.0
    %476 = vmatprep.subr.mxu0 0.0
    %477 = vmatpush2.msra.mxu0 0.0
    %478 = vmatprep.subr.mxu0 0.0
    %479 = vmatpush2.msra.mxu0 0.0
    %480 = vmatprep.subr.mxu0 0.0
    %481 = vmatpush2.msra.mxu0 0.0
    %482 = vmatprep.mubr.f32.mxu0 0.0
    %483 = vmatmul.mubr.f32.gmra.mxu0 %v410
    %v484 = vpop.f32.mrf.mxu0
    %v485 = vadd.f32 %v392, %v484
    %v486 = vpop.f32.mrf.mxu0
    %487 = vmatprep.mubr.f32.mxu0 0.0
    %488 = vmatmul.mubr.f32.gmra.mxu0 %v412
    %v489 = vpop.f32.mrf.mxu0
    %v490 = vadd.f32 %v397, %v489
    %v491 = vpop.f32.mrf.mxu0
    %492 = vmatprep.mubr.f32.mxu0 0.0
    %493 = vmatmul.mubr.f32.gmra.mxu0 %v414
    %v494 = vpop.f32.mrf.mxu0
    %v495 = vadd.f32 %v402, %v494
    %v496 = vpop.f32.mrf.mxu0
    %497 = vmatprep.mubr.f32.mxu0 0.0
    %498 = vmatmul.mubr.f32.gmra.mxu0 %v416
    %v499 = vpop.f32.mrf.mxu0
    %v500 = vadd.f32 %v407, %v499
    %v501 = vpop.f32.mrf.mxu0
    %502 = vdwg.mxu0
    %v503 = vmul.f32 %v485, 0.5
    %v504 = vmul.f32 %v490, 0.5
    %v505 = vmul.f32 %v495, 0.5
    %v506 = vmul.f32 %v500, 0.5
    %v507 = vmul.f32 %v485, 0.044715
    %v508 = vmul.f32 %v490, 0.044715
    %v509 = vmul.f32 %v495, 0.044715
    %v510 = vmul.f32 %v500, 0.044715
    %v511 = vmul.f32 %v507, %v485
    %v512 = vmul.f32 %v508, %v490
    %v513 = vmul.f32 %v509, %v495
    %v514 = vmul.f32 %v510, %v500
    %v515 = vmul.f32 %v511, %v485
    %v516 = vmul.f32 %v512, %v490
    %v517 = vmul.f32 %v513, %v495
    %v518 = vmul.f32 %v514, %v500
    %v519 = vadd.f32 %v485, %v515
    %v520 = vadd.f32 %v490, %v516
    %v521 = vadd.f32 %v495, %v517
    %v522 = vadd.f32 %v500, %v518
    %v523 = vmul.f32 %v519, 0.7978846
    %v524 = vmul.f32 %v520, 0.7978846
    %v525 = vmul.f32 %v521, 0.7978846
    %v526 = vmul.f32 %v522, 0.7978846
    %v527 = vtanh.pop %v523
    %v528 = vtanh.pop %v524
    %v529 = vtanh.pop %v525
    %v530 = vtanh.pop %v526
    %v531 = vadd.f32 %v527, 1.0
    %v532 = vadd.f32 %v528, 1.0
    %v533 = vadd.f32 %v529, 1.0
    %v534 = vadd.f32 %v530, 1.0
    %v535 = vmul.f32 %v503, %v531
    %v536 = vmul.f32 %v504, %v532
    %v537 = vmul.f32 %v505, %v533
    %v538 = vmul.f32 %v506, %v534
    %540 = vset.pattern.permute.xlu0 32
    %541 = vperm.xlu0 %540, %v33
    %v542 = vpop.permute.xlu0 %541
    %vm544 = vcmask 261120
    %v545 = vsel %vm544, %v33, 0
    %547 = vmatprep.subr.mxu0 0.0
    %548 = vmatpush1.msra.mxu0 0.0
    %549 = vmatprep.subr.mxu0 0.0
    %550 = vmatpush1.msra.mxu0 0.0
    %551 = vmatprep.subr.mxu0 0.0
    %552 = vmatpush1.msra.mxu0 0.0
    %553 = vmatprep.subr.mxu0 0.0
    %554 = vmatpush1.msra.mxu0 0.0
    %555 = vmatprep.subr.mxu0 0.0
    %556 = vmatpush1.msra.mxu0 0.0
    %557 = vmatprep.subr.mxu0 0.0
    %558 = vmatpush1.msra.mxu0 0.0
    %559 = vmatprep.subr.mxu0 0.0
    %560 = vmatpush1.msra.mxu0 0.0
    %561 = vmatprep.subr.mxu0 0.0
    %562 = vmatpush1.msra.mxu0 0.0
    %563 = vmatprep.subr.mxu0 0.0
    %564 = vmatpush1.msra.mxu0 0.0
    %565 = vmatprep.subr.mxu0 0.0
    %566 = vmatpush1.msra.mxu0 0.0
    %567 = vmatprep.subr.mxu0 0.0
    %568 = vmatpush1.msra.mxu0 0.0
    %569 = vmatprep.subr.mxu0 0.0
    %570 = vmatpush1.msra.mxu0 0.0
    %571 = vmatprep.subr.mxu0 0.0
    %572 = vmatpush1.msra.mxu0 %v538
    %573 = vmatprep.subr.mxu0 0.0
    %574 = vmatpush1.msra.mxu0 %v537
    %575 = vmatprep.subr.mxu0 0.0
    %576 = vmatpush1.msra.mxu0 %v536
    %577 = vmatprep.subr.mxu0 0.0
    %578 = vmatpush1.msra.mxu0 %v535
    %579 = vmatprep.subr.mxu0 0.0
    %580 = vmatpush2.msra.mxu0 0.0
    %581 = vmatprep.subr.mxu0 0.0
    %582 = vmatpush2.msra.mxu0 0.0
    %583 = vmatprep.subr.mxu0 0.0
    %584 = vmatpush2.msra.mxu0 0.0
    %585 = vmatprep.subr.mxu0 0.0
    %586 = vmatpush2.msra.mxu0 0.0
    %587 = vmatprep.subr.mxu0 0.0
    %588 = vmatpush2.msra.mxu0 0.0
    %589 = vmatprep.subr.mxu0 0.0
    %590 = vmatpush2.msra.mxu0 0.0
    %591 = vmatprep.subr.mxu0 0.0
    %592 = vmatpush2.msra.mxu0 0.0
    %593 = vmatprep.subr.mxu0 0.0
    %594 = vmatpush2.msra.mxu0 0.0
    %595 = vmatprep.subr.mxu0 0.0
    %596 = vmatpush2.msra.mxu0 0.0
    %597 = vmatprep.subr.mxu0 0.0
    %598 = vmatpush2.msra.mxu0 0.0
    %599 = vmatprep.subr.mxu0 0.0
    %600 = vmatpush2.msra.mxu0 0.0
    %601 = vmatprep.subr.mxu0 0.0
    %602 = vmatpush2.msra.mxu0 0.0
    %603 = vmatprep.subr.mxu0 0.0
    %604 = vmatpush2.msra.mxu0 0.0
    %605 = vmatprep.subr.mxu0 0.0
    %606 = vmatpush2.msra.mxu0 0.0
    %607 = vmatprep.subr.mxu0 0.0
    %608 = vmatpush2.msra.mxu0 0.0
    %609 = vmatprep.subr.mxu0 0.0
    %610 = vmatpush2.msra.mxu0 0.0
    %611 = vmatprep.mubr.f32.mxu0 0.0
    %612 = vmatmul.mubr.f32.gmra.mxu0 %v545
    %v613 = vpop.f32.mrf.mxu0
    %v614 = vadd.f32 %v542, %v613
    %v615 = vpop.f32.mrf.mxu0
    %616 = vdwg.mxu0
    %v617 = vadd.f32 %v366, %v614
    %618 = vst [vmem:[#allocation2] sm:$0xff] %v617
    // Predicated region
    $region10: #{tpu_custom_call.1} parent=1 // pred_check
      _
    $region11: #{tpu_custom_call.1} parent=1 // pred_check_branch
      %620 = sbr.rel (0) target = $region13
    $region12: #{tpu_custom_call.1} parent=1 // pred_region
      %s622 = ssub.s32 128, 128
      %623 = vsyncadd [#allocation3], %s622
      %s625 = sshll.u32 [#allocation2], 4
      %s626 = int_to_ptr.vmem [resolvable:$true] %s625
      %628 = dma.vmem_to_hbm [thread:$0]  %s626, 128, %s2, [#allocation3]
    $region13: #{tpu_custom_call.1} parent=1 // pred_fallthru
      _
    // Predicated region
    $region14: #{tpu_custom_call.1} parent=1 // pred_check
      _
    $region15: #{tpu_custom_call.1} parent=1 // pred_check_branch
      %630 = sbr.rel (0) target = $region17
    $region16: #{tpu_custom_call.1} parent=1 // pred_region
      %631 = dma.done [#allocation3], 128
    $region17: #{tpu_custom_call.1} parent=1 // pred_fallthru
      _
    %632 = vsyncpa [#allocation3], 1

</llo_original>
